<compile_context>
chip_gen: v7x
topology: tpu7x:2x2x1
jax: 0.10.0
libtpu: 0.0.40
codegen_flags: <defaults>
</compile_context>

<pallas_src>
import jax
import jax.numpy as jnp
from jax import lax
from jax.experimental import pallas as pl
from jax.experimental.pallas import tpu as pltpu


def _make_attention_kernel(mxu_bf16: bool, approx_recip: bool):
    """Build the fused attention kernel body.

    mxu_bf16=True casts MXU operands to bf16 (accumulation stays f32) — a v6e/v7x
    throughput option for large shapes; default False keeps f32 parity with PyTorch.
    approx_recip=True uses the EUP approximate reciprocal for the softmax denominator.
    """

    def _mxu(x):
        return x.astype(jnp.bfloat16) if mxu_bf16 else x

    def kernel(bias_ref, q_ref, k_ref, w_ref, v_ref, weights_ref, out_ref):
        # bias_ref : SMEM (1,)
        # q_ref    : VMEM (bb, tq, D)     k_ref : VMEM (bb, Lk, D)
        # w_ref    : VMEM (D, D)          v_ref : VMEM (bb, Lk, Dv)
        q = q_ref[...]
        k = k_ref[...]
        v = v_ref[...]
        w = w_ref[...]
        bb, tq, D = q.shape

        # query @ W as one fused (bb*tq, D) @ (D, D) GEMM.
        qw = lax.dot_general(
            _mxu(q.reshape(bb * tq, D)), _mxu(w),
            dimension_numbers=(((1,), (0,)), ((), ())),
            preferred_element_type=jnp.float32,
        ).reshape(bb, tq, D)

        # scores[b, i, j] = sum_d qw[b, i, d] * key[b, j, d]
        # Contract on the last dim of both operands -> no explicit key.T.
        scores = lax.dot_general(
            _mxu(qw), _mxu(k),
            dimension_numbers=(((2,), (2,)), ((0,), (0,))),
            preferred_element_type=jnp.float32,
        )
        scores = jnp.tanh(scores + bias_ref[0])

        # Softmax over the last dim. tanh bounds scores to [-1, 1], so the usual
        # max-subtraction (cross-lane XLU reduce + VPU subtract) is unnecessary and
        # exp cannot overflow. Softmax is shift-invariant, so this matches PyTorch.
        e = jnp.exp(scores)
        denom = jnp.sum(e, axis=-1, keepdims=True)
        if approx_recip:
            weights = e * pl.reciprocal(denom, approx=True)  # EUP slot (free-ish)
        else:
            weights = e / denom

        weights_ref[...] = weights.astype(weights_ref.dtype)

        # attended[b, i, :] = sum_j weights[b, i, j] * value[b, j, :]
        attended = lax.dot_general(
            _mxu(weights), _mxu(v),
            dimension_numbers=(((2,), (1,)), ((0,), (0,))),
            preferred_element_type=jnp.float32,
        )
        out_ref[...] = attended.astype(out_ref.dtype)

    return kernel


def attention_module(key, query, value, W, bias, *,
                     batch_block=None, q_block=None,
                     mxu_bf16=False, approx_recip=True):
    """Pallas implementation of AttentionModule.forward (dropout=None, B > 1 branch).

    Returns (weights, attended) exactly like the PyTorch module.

    By default the whole batch is processed in a single grid step (test shapes are tiny
    compared to one MXU tile / vreg). For large problems pass `batch_block` / `q_block`
    to tile the batch / query-length axes so the double-buffered resident set stays
    inside VMEM (64 MiB per TensorCore on v7x); key/value/W stay resident across the
    query-tile axis.
    """
    B, Lq, D = query.shape
    _, Lk, _ = key.shape
    Dv = value.shape[-1]

    bb = B if batch_block is None else min(batch_block, B)
    tq = Lq if q_block is None else min(q_block, Lq)
    grid = (pl.cdiv(B, bb), pl.cdiv(Lq, tq))

    kernel = _make_attention_kernel(mxu_bf16, approx_recip)

    weights, out = pl.pallas_call(
        kernel,
        out_shape=(
            jax.ShapeDtypeStruct((B, Lq, Lk), query.dtype),
            jax.ShapeDtypeStruct((B, Lq, Dv), query.dtype),
        ),
        grid_spec=pltpu.PrefetchScalarGridSpec(
            num_scalar_prefetch=0,
            grid=grid,
            in_specs=[
                # bias: scalar, lives in SMEM.
                pl.BlockSpec(memory_space=pltpu.MemorySpace.SMEM),
                # query: tiled over (batch-chunk, query-length-chunk).
                pl.BlockSpec((bb, tq, D), lambda b, qi: (b, qi, 0)),
                # key / value: resident across the query-tile axis.
                pl.BlockSpec((bb, Lk, D), lambda b, qi: (b, 0, 0)),
                # W: shared across the whole grid (constant index_map => never re-fetched).
                pl.BlockSpec((D, D), lambda b, qi: (0, 0)),
                pl.BlockSpec((bb, Lk, Dv), lambda b, qi: (b, 0, 0)),
            ],
            out_specs=[
                pl.BlockSpec((bb, tq, Lk), lambda b, qi: (b, qi, 0)),
                pl.BlockSpec((bb, tq, Dv), lambda b, qi: (b, qi, 0)),
            ],
        ),
        compiler_params=pltpu.CompilerParams(
            # Both grid axes are independent -> shard across TensorCores / megacore.
            dimension_semantics=("parallel", "parallel"),
            # Allow bigger-than-default tiles while leaving headroom under v7x's
            # 64 MiB physical VMEM (v5e/v6e have 128 MiB, so this is always safe).
            vmem_limit_bytes=48 * 1024 * 1024,
        ),
    )(bias, query, key, W, value)
    return weights, out


def _reference(key, query, value, W, bias):
    qw = jnp.einsum("bqd,de->bqe", query, W)
    scores = jnp.einsum("bqe,bke->bqk", qw, key)
    weights = jax.nn.softmax(jnp.tanh(scores + bias[0]), axis=-1)
    out = jnp.einsum("bqk,bkv->bqv", weights, value)
    return weights, out


if __name__ == "__main__":
    B, Lq, Lk, d_model, d_v = 2, 8, 8, 32, 32

    root = jax.random.PRNGKey(0)
    k_w, k_b, k_key, k_query, k_value = jax.random.split(root, 5)

    # Deterministic "randn"-style parameter init (as in the module's __init__).
    W = jax.random.normal(k_w, (d_model, d_model), dtype=jnp.float32)
    bias = jax.random.normal(k_b, (1,), dtype=jnp.float32)

    key_in = jax.random.normal(k_key, (B, Lk, d_model), dtype=jnp.float32)
    query_in = jax.random.normal(k_query, (B, Lq, d_model), dtype=jnp.float32)
    value_in = jax.random.normal(k_value, (B, Lk, d_v), dtype=jnp.float32)

    weights, out = attention_module(key_in, query_in, value_in, W, bias)
    jax.block_until_ready((weights, out))

    w_ref, o_ref = _reference(key_in, query_in, value_in, W, bias)
    # approx=True EUP reciprocal limits agreement to ~1e-4-relative, hence the
    # slightly looser tolerance than pure-f32 math.
    assert jnp.allclose(weights, w_ref, atol=2e-3, rtol=2e-3)
    assert jnp.allclose(out, o_ref, atol=2e-3, rtol=2e-3)

    print("KERNEL_OK")
</pallas_src>

<mosaic_0001>
module attributes {stable_mosaic.version = 11 : i64} {
  func.func @kernel(%arg0: i32, %arg1: i32, %arg2: memref<1xf32, #tpu.memory_space<smem>>, %arg3: memref<2x8x32xf32, #tpu.memory_space<vmem>>, %arg4: memref<2x8x32xf32, #tpu.memory_space<vmem>>, %arg5: memref<32x32xf32, #tpu.memory_space<vmem>>, %arg6: memref<2x8x32xf32, #tpu.memory_space<vmem>>, %arg7: memref<2x8x8xf32, #tpu.memory_space<vmem>>, %arg8: memref<2x8x32xf32, #tpu.memory_space<vmem>>) attributes {dimension_semantics = [#tpu.dimension_semantics<parallel>, #tpu.dimension_semantics<parallel>], iteration_bounds = array<i64: 1, 1>, scalar_prefetch = 0 : i64, scratch_operands = 0 : i64, tpu.core_type = #tpu.core_type<tc>, window_params = [{transform_indices = @transform_0, window_bounds = array<i64: 1>}, {transform_indices = @transform_1, window_bounds = array<i64: 2, 8, 32>}, {transform_indices = @transform_2, window_bounds = array<i64: 2, 8, 32>}, {pipeline_mode = #tpu.pipeline_mode<synchronous>, transform_indices = @transform_3, window_bounds = array<i64: 32, 32>}, {transform_indices = @transform_4, window_bounds = array<i64: 2, 8, 32>}, {transform_indices = @transform_5, window_bounds = array<i64: 2, 8, 8>}, {transform_indices = @transform_6, window_bounds = array<i64: 2, 8, 32>}]} {
    %c0 = arith.constant 0 : index
    %c0_0 = arith.constant 0 : index
    %c0_1 = arith.constant 0 : index
    %0 = vector.load %arg3[%c0, %c0_0, %c0_1] : memref<2x8x32xf32, #tpu.memory_space<vmem>>, vector<2x8x32xf32>
    %c0_2 = arith.constant 0 : index
    %c0_3 = arith.constant 0 : index
    %c0_4 = arith.constant 0 : index
    %1 = vector.load %arg4[%c0_2, %c0_3, %c0_4] : memref<2x8x32xf32, #tpu.memory_space<vmem>>, vector<2x8x32xf32>
    %c0_5 = arith.constant 0 : index
    %c0_6 = arith.constant 0 : index
    %c0_7 = arith.constant 0 : index
    %2 = vector.load %arg6[%c0_5, %c0_6, %c0_7] : memref<2x8x32xf32, #tpu.memory_space<vmem>>, vector<2x8x32xf32>
    %c0_8 = arith.constant 0 : index
    %c0_9 = arith.constant 0 : index
    %3 = vector.load %arg5[%c0_8, %c0_9] : memref<32x32xf32, #tpu.memory_space<vmem>>, vector<32x32xf32>
    %4 = vector.shape_cast %0 : vector<2x8x32xf32> to vector<16x32xf32>
    %cst = arith.constant dense<0.000000e+00> : vector<16x32xf32>
    %5 = tpu.matmul %4, %3, %cst {dimension_numbers = #tpu.dot_dimension_numbers<[1], [0], [0], [1], [0, 0, 1, 1], [], []>} : vector<16x32xf32>, vector<32x32xf32>, vector<16x32xf32> -> vector<16x32xf32>
    %6 = vector.shape_cast %5 : vector<16x32xf32> to vector<2x8x32xf32>
    %cst_10 = arith.constant dense<0.000000e+00> : vector<2x8x8xf32>
    %7 = tpu.matmul %6, %1, %cst_10 {dimension_numbers = #tpu.dot_dimension_numbers<[2], [2], [1], [1], [0, 0, 0, 1, 1, 1], [0], [0]>} : vector<2x8x32xf32>, vector<2x8x32xf32>, vector<2x8x8xf32> -> vector<2x8x8xf32>
    %c0_11 = arith.constant 0 : index
    %8 = memref.load %arg2[%c0_11] : memref<1xf32, #tpu.memory_space<smem>>
    %9 = vector.broadcast %8 : f32 to vector<2x8x8xf32>
    %10 = arith.addf %7, %9 : vector<2x8x8xf32>
    %11 = math.tanh %10 : vector<2x8x8xf32>
    %12 = math.exp %11 : vector<2x8x8xf32>
    %cst_12 = arith.constant dense<0.000000e+00> : vector<2x8xf32>
    %13 = vector.multi_reduction <add>, %12, %cst_12 [2] : vector<2x8x8xf32> to vector<2x8xf32>
    %14 = vector.shape_cast %13 : vector<2x8xf32> to vector<2x8x1xf32>
    %15 = tpu.reciprocal %14 {approx = true} : vector<2x8x1xf32> -> vector<2x8x1xf32>
    %16 = vector.broadcast %15 : vector<2x8x1xf32> to vector<2x8x8xf32>
    %17 = arith.mulf %12, %16 : vector<2x8x8xf32>
    %c0_13 = arith.constant 0 : index
    %c0_14 = arith.constant 0 : index
    %c0_15 = arith.constant 0 : index
    %18 = vector.load %arg7[%c0_13, %c0_14, %c0_15] : memref<2x8x8xf32, #tpu.memory_space<vmem>>, vector<2x8x8xf32>
    tpu.vector_store %arg7[%c0_13, %c0_14, %c0_15], %17 {strides = array<i32>} : memref<2x8x8xf32, #tpu.memory_space<vmem>>, vector<2x8x8xf32>,
    %cst_16 = arith.constant dense<0.000000e+00> : vector<2x8x32xf32>
    %19 = tpu.matmul %17, %2, %cst_16 {dimension_numbers = #tpu.dot_dimension_numbers<[2], [1], [1], [2], [0, 0, 0, 1, 1, 2], [0], [0]>} : vector<2x8x8xf32>, vector<2x8x32xf32>, vector<2x8x32xf32> -> vector<2x8x32xf32>
    %c0_17 = arith.constant 0 : index
    %c0_18 = arith.constant 0 : index
    %c0_19 = arith.constant 0 : index
    %20 = vector.load %arg8[%c0_17, %c0_18, %c0_19] : memref<2x8x32xf32, #tpu.memory_space<vmem>>, vector<2x8x32xf32>
    tpu.vector_store %arg8[%c0_17, %c0_18, %c0_19], %19 {strides = array<i32>} : memref<2x8x32xf32, #tpu.memory_space<vmem>>, vector<2x8x32xf32>,
    return
  }
  func.func @transform_0(%arg0: i32, %arg1: i32) -> i32 {
    %c0_i32 = arith.constant 0 : i32
    %c0_i32_0 = arith.constant 0 : i32
    return %c0_i32 : i32
  }
  func.func @transform_1(%arg0: i32, %arg1: i32) -> (i32, i32, i32) {
    %c0_i32 = arith.constant 0 : i32
    %c0_i32_0 = arith.constant 0 : i32
    return %arg0, %arg1, %c0_i32 : i32, i32, i32
  }
  func.func @transform_2(%arg0: i32, %arg1: i32) -> (i32, i32, i32) {
    %c0_i32 = arith.constant 0 : i32
    %c0_i32_0 = arith.constant 0 : i32
    %c0_i32_1 = arith.constant 0 : i32
    return %arg0, %c0_i32, %c0_i32_0 : i32, i32, i32
  }
  func.func @transform_3(%arg0: i32, %arg1: i32) -> (i32, i32) {
    %c0_i32 = arith.constant 0 : i32
    %c0_i32_0 = arith.constant 0 : i32
    %c0_i32_1 = arith.constant 0 : i32
    return %c0_i32, %c0_i32_0 : i32, i32
  }
  func.func @transform_4(%arg0: i32, %arg1: i32) -> (i32, i32, i32) {
    %c0_i32 = arith.constant 0 : i32
    %c0_i32_0 = arith.constant 0 : i32
    %c0_i32_1 = arith.constant 0 : i32
    return %arg0, %c0_i32, %c0_i32_0 : i32, i32, i32
  }
  func.func @transform_5(%arg0: i32, %arg1: i32) -> (i32, i32, i32) {
    %c0_i32 = arith.constant 0 : i32
    %c0_i32_0 = arith.constant 0 : i32
    return %arg0, %arg1, %c0_i32 : i32, i32, i32
  }
  func.func @transform_6(%arg0: i32, %arg1: i32) -> (i32, i32, i32) {
    %c0_i32 = arith.constant 0 : i32
    %c0_i32_0 = arith.constant 0 : i32
    return %arg0, %arg1, %c0_i32 : i32, i32, i32
  }
}

</mosaic_0001>

<llo_original>
// kernel: tpu_custom_call.1
$region0: #{tpu_custom_call.1}
  #allocation0 [shape = 'u32[]', space=smem, size = 0x4, offset = 0x4, fixed_abs, tag = 'smem constant byte address 0x4 - core index']
  #allocation1 [shape = 'u32[144,128]{1,0:T(1,128)}', space=vmem, size = 0x12000, scoped, tag = 'internal scratch']
  #allocation2 [shape = 'f32[1]{0:T(128)S(6)}', space=smem, size = 0x200, scoped, tag = 'scoped memory for tpu_custom_call.1']
  %s0 = inlined_call_operand.<no memory space> [shape: f32[1], index: 0, kind: input, shape index: {}]
  %s1 = inlined_call_operand.hbm [shape: f32[2,8,32], index: 1, kind: input, shape index: {}]
  %s2 = inlined_call_operand.hbm [shape: f32[2,8,32], index: 2, kind: input, shape index: {}]
  %s3 = inlined_call_operand.hbm [shape: f32[32,32], index: 3, kind: input, shape index: {}]
  %s4 = inlined_call_operand.hbm [shape: f32[2,8,32], index: 4, kind: input, shape index: {}]
  %s5 = inlined_call_operand.hbm [shape: f32[2,8,8], index: 5, kind: output, shape index: {0}]
  %s6 = inlined_call_operand.hbm [shape: f32[2,8,32], index: 6, kind: output, shape index: {1}]
  %7 = xla_tuple %s5, %s6
  %s8 = sld [smem:[#allocation0]]
  $region54: #{tpu_custom_call.1} parent=0
    _
  %s10 = ssub.s32 1, %s8
  %s11 = scalar_select 0, %s10, %s8
  %12 = sst [smem:[#allocation2]] %s0
  $region1: #{tpu_custom_call.1} parent=0
    #allocation3 [shape = 'u8[8192]{0}', space=vmem, size = 0x2000, scoped, tag = 'input window, operand 1, single buffered']
    #allocation4 [shape = 's32[1]{0}', space=sflag, size = 0x4, scoped, tag = 'scoped memory for tpu_custom_call.1']
    #allocation5 [shape = 's32[1]{0}', space=sflag, size = 0x4, scoped, tag = 'scoped memory for tpu_custom_call.1']
    #allocation6 [shape = 'u8[8192]{0}', space=vmem, size = 0x2000, scoped, tag = 'input window, operand 2, single buffered']
    #allocation7 [shape = 's32[1]{0}', space=sflag, size = 0x4, scoped, tag = 'scoped memory for tpu_custom_call.1']
    #allocation8 [shape = 'u8[16384]{0}', space=vmem, size = 0x4000, scoped, tag = 'input window, operand 3, single buffered']
    #allocation9 [shape = 'u8[8192]{0}', space=vmem, size = 0x2000, scoped, tag = 'input window, operand 4, single buffered']
    #allocation10 [shape = 's32[1]{0}', space=sflag, size = 0x4, scoped, tag = 'scoped memory for tpu_custom_call.1']
    #allocation11 [shape = 'u8[8192]{0}', space=vmem, size = 0x2000, scoped, tag = 'output window, operand 0, single buffered']
    #allocation12 [shape = 'u8[8192]{0}', space=vmem, size = 0x2000, scoped, tag = 'output window, operand 1, single buffered']
    #allocation13 [shape = 's32[1]{0}', space=sflag, size = 0x4, scoped, tag = 'scoped memory for tpu_custom_call.1']
    %13 = vsyncpa [#allocation4], 0
    %14 = vsyncpa [#allocation7], 0
    %15 = vsyncpa [#allocation10], 0
    %16 = vsyncpa [#allocation5], 0
    %17 = vsyncpa [#allocation13], 0
    // Predicated region
    $region2: #{tpu_custom_call.1} parent=1 // pred_check
      _
    $region3: #{tpu_custom_call.1} parent=1 // pred_check_branch
      %19 = sbr.rel (0) target = $region5
    $region4: #{tpu_custom_call.1} parent=1 // pred_region
      _
    $region5: #{tpu_custom_call.1} parent=1 // pred_fallthru
      _
    // Predicated region
    $region6: #{tpu_custom_call.1} parent=1 // pred_check
      _
    $region7: #{tpu_custom_call.1} parent=1 // pred_check_branch
      %21 = sbr.rel (0) target = $region9
    $region8: #{tpu_custom_call.1} parent=1 // pred_region
      %s23 = ssub.s32 256, 256
      %24 = vsyncadd [#allocation4], %s23
      %s25 = sshll.u32 [#allocation3], 4
      %s26 = int_to_ptr.vmem [resolvable:$true] %s25
      %31 = dma.hbm_to_vmem [thread:$0]  %s1, 256, %s26, [#allocation4], 128, 128, 8
    $region9: #{tpu_custom_call.1} parent=1 // pred_fallthru
      _
    // Predicated region
    $region10: #{tpu_custom_call.1} parent=1 // pred_check
      _
    $region11: #{tpu_custom_call.1} parent=1 // pred_check_branch
      %33 = sbr.rel (0) target = $region13
    $region12: #{tpu_custom_call.1} parent=1 // pred_region
      %s35 = ssub.s32 256, 256
      %36 = vsyncadd [#allocation7], %s35
      %s37 = sshll.u32 [#allocation6], 4
      %s38 = int_to_ptr.vmem [resolvable:$true] %s37
      %43 = dma.hbm_to_vmem [thread:$0]  %s2, 256, %s38, [#allocation7], 128, 128, 8
    $region13: #{tpu_custom_call.1} parent=1 // pred_fallthru
      _
    // Predicated region
    $region14: #{tpu_custom_call.1} parent=1 // pred_check
      _
    $region15: #{tpu_custom_call.1} parent=1 // pred_check_branch
      %45 = sbr.rel (0) target = $region17
    $region16: #{tpu_custom_call.1} parent=1 // pred_region
      %s47 = ssub.s32 512, 512
      %48 = vsyncadd [#allocation7], %s47
      %s49 = sshll.u32 [#allocation8], 4
      %s50 = int_to_ptr.vmem [resolvable:$true] %s49
      %55 = dma.hbm_to_vmem [thread:$0]  %s3, 512, %s50, [#allocation7], 128, 128, 8
    $region17: #{tpu_custom_call.1} parent=1 // pred_fallthru
      _
    // Predicated region
    $region18: #{tpu_custom_call.1} parent=1 // pred_check
      _
    $region19: #{tpu_custom_call.1} parent=1 // pred_check_branch
      %57 = sbr.rel (0) target = $region21
    $region20: #{tpu_custom_call.1} parent=1 // pred_region
      %s59 = ssub.s32 256, 256
      %60 = vsyncadd [#allocation10], %s59
      %s61 = sshll.u32 [#allocation9], 4
      %s62 = int_to_ptr.vmem [resolvable:$true] %s61
      %67 = dma.hbm_to_vmem [thread:$0]  %s4, 256, %s62, [#allocation10], 128, 128, 8
    $region21: #{tpu_custom_call.1} parent=1 // pred_fallthru
      _
    // Predicated region
    $region22: #{tpu_custom_call.1} parent=1 // pred_check
      _
    $region23: #{tpu_custom_call.1} parent=1 // pred_check_branch
      %69 = sbr.rel (0) target = $region25
    $region24: #{tpu_custom_call.1} parent=1 // pred_region
      %70 = dma.done [#allocation4], 256
    $region25: #{tpu_custom_call.1} parent=1 // pred_fallthru
      _
    // Predicated region
    $region26: #{tpu_custom_call.1} parent=1 // pred_check
      _
    $region27: #{tpu_custom_call.1} parent=1 // pred_check_branch
      %72 = sbr.rel (0) target = $region29
    $region28: #{tpu_custom_call.1} parent=1 // pred_region
      %73 = dma.done [#allocation7], 256
    $region29: #{tpu_custom_call.1} parent=1 // pred_fallthru
      _
    // Predicated region
    $region30: #{tpu_custom_call.1} parent=1 // pred_check
      _
    $region31: #{tpu_custom_call.1} parent=1 // pred_check_branch
      %75 = sbr.rel (0) target = $region33
    $region32: #{tpu_custom_call.1} parent=1 // pred_region
      %76 = dma.done [#allocation7], 512
    $region33: #{tpu_custom_call.1} parent=1 // pred_fallthru
      _
    // Predicated region
    $region34: #{tpu_custom_call.1} parent=1 // pred_check
      _
    $region35: #{tpu_custom_call.1} parent=1 // pred_check_branch
      %78 = sbr.rel (0) target = $region37
    $region36: #{tpu_custom_call.1} parent=1 // pred_region
      %79 = dma.done [#allocation10], 256
    $region37: #{tpu_custom_call.1} parent=1 // pred_fallthru
      _
    %v80 = vld [vmem:[#allocation3] sm:$0xff]
    %v81 = vld [vmem:[#allocation3 + $0x8] sm:$0xff]
    %v82 = vld [vmem:[#allocation6] sm:$0xff]
    %v83 = vld [vmem:[#allocation6 + $0x8] sm:$0xff]
    %v84 = vld [vmem:[#allocation9] sm:$0xff]
    %v85 = vld [vmem:[#allocation9 + $0x8] sm:$0xff]
    %v86 = vld [vmem:[#allocation8] sm:$0xff]
    %v87 = vld [vmem:[#allocation8 + $0x8] sm:$0xff]
    %v88 = vld [vmem:[#allocation8 + $0x10] sm:$0xff]
    %v89 = vld [vmem:[#allocation8 + $0x18] sm:$0xff]
    %vm90 = vcmask 261120
    %v92 = vsel %vm90, %v80, 0
    %v95 = vsel %vm90, %v81, 0
    %97 = vmatprep.subr.mxu0 0.0
    %98 = vmatpush1.msra.mxu0 %v86
    %99 = vmatprep.subr.mxu0 0.0
    %100 = vmatpush1.msra.mxu0 %v87
    %101 = vmatprep.subr.mxu0 0.0
    %102 = vmatpush1.msra.mxu0 %v88
    %103 = vmatprep.subr.mxu0 0.0
    %104 = vmatpush1.msra.mxu0 %v89
    %105 = vmatprep.subr.mxu0 0.0
    %106 = vmatpush1.msra.mxu0 0.0
    %107 = vmatprep.subr.mxu0 0.0
    %108 = vmatpush1.msra.mxu0 0.0
    %109 = vmatprep.subr.mxu0 0.0
    %110 = vmatpush1.msra.mxu0 0.0
    %111 = vmatprep.subr.mxu0 0.0
    %112 = vmatpush1.msra.mxu0 0.0
    %113 = vmatprep.subr.mxu0 0.0
    %114 = vmatpush1.msra.mxu0 0.0
    %115 = vmatprep.subr.mxu0 0.0
    %116 = vmatpush1.msra.mxu0 0.0
    %117 = vmatprep.subr.mxu0 0.0
    %118 = vmatpush1.msra.mxu0 0.0
    %119 = vmatprep.subr.mxu0 0.0
    %120 = vmatpush1.msra.mxu0 0.0
    %121 = vmatprep.subr.mxu0 0.0
    %122 = vmatpush1.msra.mxu0 0.0
    %123 = vmatprep.subr.mxu0 0.0
    %124 = vmatpush1.msra.mxu0 0.0
    %125 = vmatprep.subr.mxu0 0.0
    %126 = vmatpush1.msra.mxu0 0.0
    %127 = vmatprep.subr.mxu0 0.0
    %128 = vmatpush1.msra.mxu0 0.0
    %129 = vmatprep.subr.mxu0 0.0
    %130 = vmatpush1.msra.mxu0 0.0
    %131 = vmatprep.subr.mxu0 0.0
    %132 = vmatpush1.msra.mxu0 0.0
    %133 = vmatprep.subr.mxu0 0.0
    %134 = vmatpush1.msra.mxu0 0.0
    %135 = vmatprep.subr.mxu0 0.0
    %136 = vmatpush1.msra.mxu0 0.0
    %137 = vmatprep.subr.mxu0 0.0
    %138 = vmatpush1.msra.mxu0 0.0
    %139 = vmatprep.subr.mxu0 0.0
    %140 = vmatpush1.msra.mxu0 0.0
    %141 = vmatprep.subr.mxu0 0.0
    %142 = vmatpush1.msra.mxu0 0.0
    %143 = vmatprep.subr.mxu0 0.0
    %144 = vmatpush1.msra.mxu0 0.0
    %145 = vmatprep.subr.mxu0 0.0
    %146 = vmatpush1.msra.mxu0 0.0
    %147 = vmatprep.subr.mxu0 0.0
    %148 = vmatpush1.msra.mxu0 0.0
    %149 = vmatprep.subr.mxu0 0.0
    %150 = vmatpush1.msra.mxu0 0.0
    %151 = vmatprep.subr.mxu0 0.0
    %152 = vmatpush1.msra.mxu0 0.0
    %153 = vmatprep.subr.mxu0 0.0
    %154 = vmatpush1.msra.mxu0 0.0
    %155 = vmatprep.subr.mxu0 0.0
    %156 = vmatpush1.msra.mxu0 0.0
    %157 = vmatprep.subr.mxu0 0.0
    %158 = vmatpush1.msra.mxu0 0.0
    %159 = vmatprep.subr.mxu0 0.0
    %160 = vmatpush1.msra.mxu0 0.0
    %161 = vmatprep.mubr.f32.mxu0 0.0
    %162 = vmatmul.mubr.f32.gmra.mrb[0].mxu0 %v92
    %v163 = vpop.f32.mrb[0].mxu0
    %v164 = vadd.f32 0.0, %v163
    %v165 = vpop.f32.mrb[0].mxu0
    %166 = vmatprep.mubr.f32.mxu0 0.0
    %167 = vmatmul.mubr.f32.gmra.mrb[0].mxu0 %v95
    %v168 = vpop.f32.mrb[0].mxu0
    %v169 = vadd.f32 0.0, %v168
    %v170 = vpop.f32.mrb[0].mxu0
    %171 = vdwg.mxu0
    %s172 = sld [smem:[#allocation2]]
    %v173 = vstv %s172
    %v175 = vsel %vm90, %v164, 0
    %v178 = vsel %vm90, %v82, 0
    %180 = vmatprep.subr.mxu0 0.0
    %181 = vmatpush1.xpose.msra.mxu0 %v178
    %182 = vmatprep.subr.mxu0 0.0
    %183 = vmatpush1.xpose.msra.mxu0 0.0
    %184 = vmatprep.subr.mxu0 0.0
    %185 = vmatpush1.xpose.msra.mxu0 0.0
    %186 = vmatprep.subr.mxu0 0.0
    %187 = vmatpush1.xpose.msra.mxu0 0.0
    %188 = vmatprep.subr.mxu0 0.0
    %189 = vmatpush1.xpose.msra.mxu0 0.0
    %190 = vmatprep.subr.mxu0 0.0
    %191 = vmatpush1.xpose.msra.mxu0 0.0
    %192 = vmatprep.subr.mxu0 0.0
    %193 = vmatpush1.xpose.msra.mxu0 0.0
    %194 = vmatprep.subr.mxu0 0.0
    %195 = vmatpush1.xpose.msra.mxu0 0.0
    %196 = vmatprep.subr.mxu0 0.0
    %197 = vmatpush1.xpose.msra.mxu0 0.0
    %198 = vmatprep.subr.mxu0 0.0
    %199 = vmatpush1.xpose.msra.mxu0 0.0
    %200 = vmatprep.subr.mxu0 0.0
    %201 = vmatpush1.xpose.msra.mxu0 0.0
    %202 = vmatprep.subr.mxu0 0.0
    %203 = vmatpush1.xpose.msra.mxu0 0.0
    %204 = vmatprep.subr.mxu0 0.0
    %205 = vmatpush1.xpose.msra.mxu0 0.0
    %206 = vmatprep.subr.mxu0 0.0
    %207 = vmatpush1.xpose.msra.mxu0 0.0
    %208 = vmatprep.subr.mxu0 0.0
    %209 = vmatpush1.xpose.msra.mxu0 0.0
    %210 = vmatprep.subr.mxu0 0.0
    %211 = vmatpush1.xpose.msra.mxu0 0.0
    %212 = vmatprep.subr.mxu0 0.0
    %213 = vmatpush1.xpose.msra.mxu0 0.0
    %214 = vmatprep.subr.mxu0 0.0
    %215 = vmatpush1.xpose.msra.mxu0 0.0
    %216 = vmatprep.subr.mxu0 0.0
    %217 = vmatpush1.xpose.msra.mxu0 0.0
    %218 = vmatprep.subr.mxu0 0.0
    %219 = vmatpush1.xpose.msra.mxu0 0.0
    %220 = vmatprep.subr.mxu0 0.0
    %221 = vmatpush1.xpose.msra.mxu0 0.0
    %222 = vmatprep.subr.mxu0 0.0
    %223 = vmatpush1.xpose.msra.mxu0 0.0
    %224 = vmatprep.subr.mxu0 0.0
    %225 = vmatpush1.xpose.msra.mxu0 0.0
    %226 = vmatprep.subr.mxu0 0.0
    %227 = vmatpush1.xpose.msra.mxu0 0.0
    %228 = vmatprep.subr.mxu0 0.0
    %229 = vmatpush1.xpose.msra.mxu0 0.0
    %230 = vmatprep.subr.mxu0 0.0
    %231 = vmatpush1.xpose.msra.mxu0 0.0
    %232 = vmatprep.subr.mxu0 0.0
    %233 = vmatpush1.xpose.msra.mxu0 0.0
    %234 = vmatprep.subr.mxu0 0.0
    %235 = vmatpush1.xpose.msra.mxu0 0.0
    %236 = vmatprep.subr.mxu0 0.0
    %237 = vmatpush1.xpose.msra.mxu0 0.0
    %238 = vmatprep.subr.mxu0 0.0
    %239 = vmatpush1.xpose.msra.mxu0 0.0
    %240 = vmatprep.subr.mxu0 0.0
    %241 = vmatpush1.xpose.msra.mxu0 0.0
    %242 = vmatprep.subr.mxu0 0.0
    %243 = vmatpush1.xpose.msra.mxu0 0.0
    %244 = vmatprep.mubr.f32.mxu0 0.0
    %245 = vmatmul.mubr.f32.gmra.mrb[0].mxu0 %v175
    %v246 = vpop.f32.mrb[0].mxu0
    %v247 = vadd.f32 %v173, %v246
    %v248 = vpop.f32.mrb[0].mxu0
    %249 = vdwg.mxu0
    %v251 = vsel %vm90, %v169, 0
    %v254 = vsel %vm90, %v83, 0
    %256 = vmatprep.subr.mxu0 0.0
    %257 = vmatpush1.xpose.msra.mxu0 %v254
    %258 = vmatprep.subr.mxu0 0.0
    %259 = vmatpush1.xpose.msra.mxu0 0.0
    %260 = vmatprep.subr.mxu0 0.0
    %261 = vmatpush1.xpose.msra.mxu0 0.0
    %262 = vmatprep.subr.mxu0 0.0
    %263 = vmatpush1.xpose.msra.mxu0 0.0
    %264 = vmatprep.subr.mxu0 0.0
    %265 = vmatpush1.xpose.msra.mxu0 0.0
    %266 = vmatprep.subr.mxu0 0.0
    %267 = vmatpush1.xpose.msra.mxu0 0.0
    %268 = vmatprep.subr.mxu0 0.0
    %269 = vmatpush1.xpose.msra.mxu0 0.0
    %270 = vmatprep.subr.mxu0 0.0
    %271 = vmatpush1.xpose.msra.mxu0 0.0
    %272 = vmatprep.subr.mxu0 0.0
    %273 = vmatpush1.xpose.msra.mxu0 0.0
    %274 = vmatprep.subr.mxu0 0.0
    %275 = vmatpush1.xpose.msra.mxu0 0.0
    %276 = vmatprep.subr.mxu0 0.0
    %277 = vmatpush1.xpose.msra.mxu0 0.0
    %278 = vmatprep.subr.mxu0 0.0
    %279 = vmatpush1.xpose.msra.mxu0 0.0
    %280 = vmatprep.subr.mxu0 0.0
    %281 = vmatpush1.xpose.msra.mxu0 0.0
    %282 = vmatprep.subr.mxu0 0.0
    %283 = vmatpush1.xpose.msra.mxu0 0.0
    %284 = vmatprep.subr.mxu0 0.0
    %285 = vmatpush1.xpose.msra.mxu0 0.0
    %286 = vmatprep.subr.mxu0 0.0
    %287 = vmatpush1.xpose.msra.mxu0 0.0
    %288 = vmatprep.subr.mxu0 0.0
    %289 = vmatpush1.xpose.msra.mxu0 0.0
    %290 = vmatprep.subr.mxu0 0.0
    %291 = vmatpush1.xpose.msra.mxu0 0.0
    %292 = vmatprep.subr.mxu0 0.0
    %293 = vmatpush1.xpose.msra.mxu0 0.0
    %294 = vmatprep.subr.mxu0 0.0
    %295 = vmatpush1.xpose.msra.mxu0 0.0
    %296 = vmatprep.subr.mxu0 0.0
    %297 = vmatpush1.xpose.msra.mxu0 0.0
    %298 = vmatprep.subr.mxu0 0.0
    %299 = vmatpush1.xpose.msra.mxu0 0.0
    %300 = vmatprep.subr.mxu0 0.0
    %301 = vmatpush1.xpose.msra.mxu0 0.0
    %302 = vmatprep.subr.mxu0 0.0
    %303 = vmatpush1.xpose.msra.mxu0 0.0
    %304 = vmatprep.subr.mxu0 0.0
    %305 = vmatpush1.xpose.msra.mxu0 0.0
    %306 = vmatprep.subr.mxu0 0.0
    %307 = vmatpush1.xpose.msra.mxu0 0.0
    %308 = vmatprep.subr.mxu0 0.0
    %309 = vmatpush1.xpose.msra.mxu0 0.0
    %310 = vmatprep.subr.mxu0 0.0
    %311 = vmatpush1.xpose.msra.mxu0 0.0
    %312 = vmatprep.subr.mxu0 0.0
    %313 = vmatpush1.xpose.msra.mxu0 0.0
    %314 = vmatprep.subr.mxu0 0.0
    %315 = vmatpush1.xpose.msra.mxu0 0.0
    %316 = vmatprep.subr.mxu0 0.0
    %317 = vmatpush1.xpose.msra.mxu0 0.0
    %318 = vmatprep.subr.mxu0 0.0
    %319 = vmatpush1.xpose.msra.mxu0 0.0
    %320 = vmatprep.mubr.f32.mxu0 0.0
    %321 = vmatmul.mubr.f32.gmra.mrb[0].mxu0 %v251
    %v322 = vpop.f32.mrb[0].mxu0
    %v323 = vadd.f32 %v173, %v322
    %v324 = vpop.f32.mrb[0].mxu0
    %325 = vdwg.mxu0
    %v326 = vtanh.pop %v247
    %v327 = vtanh.pop %v323
    %v328 = vmul.f32 %v326, 1.442695
    %v329 = vpow.pop %v328
    %v330 = vmul.f32 %v327, 1.442695
    %v331 = vpow.pop %v330
    %vm332 = vcmask 64512
    %v333 = vsel %vm332, %v329, 0.0
    %334 = vadd.xlane.f32.xlu0 %v333
    %v335 = vpop.xlane.xlu0 %334
    %v336 = vsel %vm332, %v331, 0.0
    %337 = vadd.xlane.f32.xlu0 %v336
    %v338 = vpop.xlane.xlu0 %337
    %v339 = vrcp.pop %v335
    %v340 = vrcp.pop %v338
    %v341 = vmul.f32 %v329, %v339
    %v342 = vmul.f32 %v331, %v340
    %343 = vst.msk [vmem:[#allocation11] sm:$0xff] %vm332, %v341
    %344 = vst.msk [vmem:[#allocation11 + $0x8] sm:$0xff] %vm332, %v342
    %v346 = vsel %vm332, %v341, 0
    %348 = vmatprep.subr.mxu0 0.0
    %349 = vmatpush1.msra.mxu0 %v84
    %350 = vmatprep.subr.mxu0 0.0
    %351 = vmatpush1.msra.mxu0 0.0
    %352 = vmatprep.subr.mxu0 0.0
    %353 = vmatpush1.msra.mxu0 0.0
    %354 = vmatprep.subr.mxu0 0.0
    %355 = vmatpush1.msra.mxu0 0.0
    %356 = vmatprep.subr.mxu0 0.0
    %357 = vmatpush1.msra.mxu0 0.0
    %358 = vmatprep.subr.mxu0 0.0
    %359 = vmatpush1.msra.mxu0 0.0
    %360 = vmatprep.subr.mxu0 0.0
    %361 = vmatpush1.msra.mxu0 0.0
    %362 = vmatprep.subr.mxu0 0.0
    %363 = vmatpush1.msra.mxu0 0.0
    %364 = vmatprep.subr.mxu0 0.0
    %365 = vmatpush1.msra.mxu0 0.0
    %366 = vmatprep.subr.mxu0 0.0
    %367 = vmatpush1.msra.mxu0 0.0
    %368 = vmatprep.subr.mxu0 0.0
    %369 = vmatpush1.msra.mxu0 0.0
    %370 = vmatprep.subr.mxu0 0.0
    %371 = vmatpush1.msra.mxu0 0.0
    %372 = vmatprep.subr.mxu0 0.0
    %373 = vmatpush1.msra.mxu0 0.0
    %374 = vmatprep.subr.mxu0 0.0
    %375 = vmatpush1.msra.mxu0 0.0
    %376 = vmatprep.subr.mxu0 0.0
    %377 = vmatpush1.msra.mxu0 0.0
    %378 = vmatprep.subr.mxu0 0.0
    %379 = vmatpush1.msra.mxu0 0.0
    %380 = vmatprep.subr.mxu0 0.0
    %381 = vmatpush1.msra.mxu0 0.0
    %382 = vmatprep.subr.mxu0 0.0
    %383 = vmatpush1.msra.mxu0 0.0
    %384 = vmatprep.subr.mxu0 0.0
    %385 = vmatpush1.msra.mxu0 0.0
    %386 = vmatprep.subr.mxu0 0.0
    %387 = vmatpush1.msra.mxu0 0.0
    %388 = vmatprep.subr.mxu0 0.0
    %389 = vmatpush1.msra.mxu0 0.0
    %390 = vmatprep.subr.mxu0 0.0
    %391 = vmatpush1.msra.mxu0 0.0
    %392 = vmatprep.subr.mxu0 0.0
    %393 = vmatpush1.msra.mxu0 0.0
    %394 = vmatprep.subr.mxu0 0.0
    %395 = vmatpush1.msra.mxu0 0.0
    %396 = vmatprep.subr.mxu0 0.0
    %397 = vmatpush1.msra.mxu0 0.0
    %398 = vmatprep.subr.mxu0 0.0
    %399 = vmatpush1.msra.mxu0 0.0
    %400 = vmatprep.subr.mxu0 0.0
    %401 = vmatpush1.msra.mxu0 0.0
    %402 = vmatprep.subr.mxu0 0.0
    %403 = vmatpush1.msra.mxu0 0.0
    %404 = vmatprep.subr.mxu0 0.0
    %405 = vmatpush1.msra.mxu0 0.0
    %406 = vmatprep.subr.mxu0 0.0
    %407 = vmatpush1.msra.mxu0 0.0
    %408 = vmatprep.subr.mxu0 0.0
    %409 = vmatpush1.msra.mxu0 0.0
    %410 = vmatprep.subr.mxu0 0.0
    %411 = vmatpush1.msra.mxu0 0.0
    %412 = vmatprep.mubr.f32.mxu0 0.0
    %413 = vmatmul.mubr.f32.gmra.mrb[0].mxu0 %v346
    %v414 = vpop.f32.mrb[0].mxu0
    %v415 = vadd.f32 0.0, %v414
    %v416 = vpop.f32.mrb[0].mxu0
    %417 = vdwg.mxu0
    %v419 = vsel %vm332, %v342, 0
    %421 = vmatprep.subr.mxu0 0.0
    %422 = vmatpush1.msra.mxu0 %v85
    %423 = vmatprep.subr.mxu0 0.0
    %424 = vmatpush1.msra.mxu0 0.0
    %425 = vmatprep.subr.mxu0 0.0
    %426 = vmatpush1.msra.mxu0 0.0
    %427 = vmatprep.subr.mxu0 0.0
    %428 = vmatpush1.msra.mxu0 0.0
    %429 = vmatprep.subr.mxu0 0.0
    %430 = vmatpush1.msra.mxu0 0.0
    %431 = vmatprep.subr.mxu0 0.0
    %432 = vmatpush1.msra.mxu0 0.0
    %433 = vmatprep.subr.mxu0 0.0
    %434 = vmatpush1.msra.mxu0 0.0
    %435 = vmatprep.subr.mxu0 0.0
    %436 = vmatpush1.msra.mxu0 0.0
    %437 = vmatprep.subr.mxu0 0.0
    %438 = vmatpush1.msra.mxu0 0.0
    %439 = vmatprep.subr.mxu0 0.0
    %440 = vmatpush1.msra.mxu0 0.0
    %441 = vmatprep.subr.mxu0 0.0
    %442 = vmatpush1.msra.mxu0 0.0
    %443 = vmatprep.subr.mxu0 0.0
    %444 = vmatpush1.msra.mxu0 0.0
    %445 = vmatprep.subr.mxu0 0.0
    %446 = vmatpush1.msra.mxu0 0.0
    %447 = vmatprep.subr.mxu0 0.0
    %448 = vmatpush1.msra.mxu0 0.0
    %449 = vmatprep.subr.mxu0 0.0
    %450 = vmatpush1.msra.mxu0 0.0
    %451 = vmatprep.subr.mxu0 0.0
    %452 = vmatpush1.msra.mxu0 0.0
    %453 = vmatprep.subr.mxu0 0.0
    %454 = vmatpush1.msra.mxu0 0.0
    %455 = vmatprep.subr.mxu0 0.0
    %456 = vmatpush1.msra.mxu0 0.0
    %457 = vmatprep.subr.mxu0 0.0
    %458 = vmatpush1.msra.mxu0 0.0
    %459 = vmatprep.subr.mxu0 0.0
    %460 = vmatpush1.msra.mxu0 0.0
    %461 = vmatprep.subr.mxu0 0.0
    %462 = vmatpush1.msra.mxu0 0.0
    %463 = vmatprep.subr.mxu0 0.0
    %464 = vmatpush1.msra.mxu0 0.0
    %465 = vmatprep.subr.mxu0 0.0
    %466 = vmatpush1.msra.mxu0 0.0
    %467 = vmatprep.subr.mxu0 0.0
    %468 = vmatpush1.msra.mxu0 0.0
    %469 = vmatprep.subr.mxu0 0.0
    %470 = vmatpush1.msra.mxu0 0.0
    %471 = vmatprep.subr.mxu0 0.0
    %472 = vmatpush1.msra.mxu0 0.0
    %473 = vmatprep.subr.mxu0 0.0
    %474 = vmatpush1.msra.mxu0 0.0
    %475 = vmatprep.subr.mxu0 0.0
    %476 = vmatpush1.msra.mxu0 0.0
    %477 = vmatprep.subr.mxu0 0.0
    %478 = vmatpush1.msra.mxu0 0.0
    %479 = vmatprep.subr.mxu0 0.0
    %480 = vmatpush1.msra.mxu0 0.0
    %481 = vmatprep.subr.mxu0 0.0
    %482 = vmatpush1.msra.mxu0 0.0
    %483 = vmatprep.subr.mxu0 0.0
    %484 = vmatpush1.msra.mxu0 0.0
    %485 = vmatprep.mubr.f32.mxu0 0.0
    %486 = vmatmul.mubr.f32.gmra.mrb[0].mxu0 %v419
    %v487 = vpop.f32.mrb[0].mxu0
    %v488 = vadd.f32 0.0, %v487
    %v489 = vpop.f32.mrb[0].mxu0
    %490 = vdwg.mxu0
    %491 = vst.msk [vmem:[#allocation12] sm:$0xff] %vm90, %v415
    %492 = vst.msk [vmem:[#allocation12 + $0x8] sm:$0xff] %vm90, %v488
    // Predicated region
    $region38: #{tpu_custom_call.1} parent=1 // pred_check
      _
    $region39: #{tpu_custom_call.1} parent=1 // pred_check_branch
      %494 = sbr.rel (0) target = $region41
    $region40: #{tpu_custom_call.1} parent=1 // pred_region
      %s496 = ssub.s32 256, 256
      %497 = vsyncadd [#allocation5], %s496
      %s498 = sshll.u32 [#allocation11], 4
      %s499 = int_to_ptr.vmem [resolvable:$true] %s498
      %504 = dma.vmem_to_hbm [thread:$0]  %s499, 256, %s5, [#allocation5], 128, 128, 8
    $region41: #{tpu_custom_call.1} parent=1 // pred_fallthru
      _
    // Predicated region
    $region42: #{tpu_custom_call.1} parent=1 // pred_check
      _
    $region43: #{tpu_custom_call.1} parent=1 // pred_check_branch
      %506 = sbr.rel (0) target = $region45
    $region44: #{tpu_custom_call.1} parent=1 // pred_region
      %s508 = ssub.s32 256, 256
      %509 = vsyncadd [#allocation13], %s508
      %s510 = sshll.u32 [#allocation12], 4
      %s511 = int_to_ptr.vmem [resolvable:$true] %s510
      %516 = dma.vmem_to_hbm [thread:$0]  %s511, 256, %s6, [#allocation13], 128, 128, 8
    $region45: #{tpu_custom_call.1} parent=1 // pred_fallthru
      _
    // Predicated region
    $region46: #{tpu_custom_call.1} parent=1 // pred_check
      _
    $region47: #{tpu_custom_call.1} parent=1 // pred_check_branch
      %518 = sbr.rel (0) target = $region49
    $region48: #{tpu_custom_call.1} parent=1 // pred_region
      %519 = dma.done [#allocation5], 256
    $region49: #{tpu_custom_call.1} parent=1 // pred_fallthru
      _
    // Predicated region
    $region50: #{tpu_custom_call.1} parent=1 // pred_check
      _
    $region51: #{tpu_custom_call.1} parent=1 // pred_check_branch
      %521 = sbr.rel (0) target = $region53
    $region52: #{tpu_custom_call.1} parent=1 // pred_region
      %522 = dma.done [#allocation13], 256
    $region53: #{tpu_custom_call.1} parent=1 // pred_fallthru
      _
    %523 = vsyncpa [#allocation4], 1
    %524 = vsyncpa [#allocation7], 1
    %525 = vsyncpa [#allocation10], 1
    %526 = vsyncpa [#allocation5], 1
    %527 = vsyncpa [#allocation13], 1

</llo_original>
